<compile_context>
chip_gen: v7x
topology: tpu7x:2x2x1
jax: 0.10.0
libtpu: 0.0.40
codegen_flags: <defaults>
</compile_context>

<pallas_src>
import jax
import jax.numpy as jnp
from jax.experimental import pallas as pl
from jax.experimental.pallas import tpu as pltpu


def film_kernel(text_ref, skel_ref, w_ref, b_ref, out_ref):
    d = out_ref.shape[-1]

    skel = skel_ref[...]                       # (bs, C)      f32
    text = text_ref[...]                       # (bs, N, D)   f32

    # Folded gamma/beta in one MXU pass: (bs, C) @ (C, 2D) + (1, 2D).
    gb = jnp.dot(skel, w_ref[...], preferred_element_type=jnp.float32) + b_ref[...]

    # Lane-aligned split at the D boundary (D is a multiple of 128 here).
    gamma = gb[:, :d]                          # (bs, D)
    beta = gb[:, d:]                           # (bs, D)

    # FiLM: broadcast gamma/beta over the label dimension (kept in f32 — v5e
    # has no bf16 VPU, and this elementwise path is tiny anyway).
    out_ref[...] = (gamma[:, None, :] * text + beta[:, None, :]).astype(out_ref.dtype)


def prepack_film_params(gamma_params, beta_params):
    """One-time parameter prep (call ONCE, outside the per-step path).

    Folds each activation-free two-layer chain into a single Linear and packs
    gamma/beta side-by-side so the kernel runs a single (C, 2D) matmul.
    """
    wg1, bg1, wg2, bg2 = gamma_params
    wb1, bb1, wb2, bb2 = beta_params

    # (x @ W1 + b1) @ W2 + b2  ==  x @ (W1 @ W2) + (b1 @ W2 + b2)
    wg = wg1 @ wg2                              # (C, D)
    bg = bg1 @ wg2 + bg2                        # (D,)
    wb = wb1 @ wb2                              # (C, D)
    bb = bb1 @ wb2 + bb2                        # (D,)

    w = jnp.concatenate([wg, wb], axis=1)       # (C, 2D)
    b = jnp.concatenate([bg, bb], axis=0)[None, :]   # (1, 2D)
    # TODO(synk): on v6e/v7x store w/b as bf16 (f32 accumulation in-kernel) to
    # halve weight DMA; re-validate tolerance if adopted.
    return w, b


def film_forward(text, skeleton, packed_w, packed_b):
    bs, n_labels, proj_dim = text.shape
    vmem = pl.BlockSpec(memory_space=pltpu.MemorySpace.VMEM)
    return pl.pallas_call(
        film_kernel,
        out_shape=jax.ShapeDtypeStruct((bs, n_labels, proj_dim), text.dtype),
        in_specs=[vmem, vmem, vmem, vmem],      # whole-array VMEM residents, no pipeline
        out_specs=vmem,
    )(text, skeleton, packed_w, packed_b)


def film_ref(text, skeleton, gamma_params, beta_params):
    """Pure-JAX reference mirroring the PyTorch FiLM forward (unfolded)."""
    wg1, bg1, wg2, bg2 = gamma_params
    wb1, bb1, wb2, bb2 = beta_params
    gamma = (skeleton @ wg1 + bg1) @ wg2 + bg2
    beta = (skeleton @ wb1 + bb1) @ wb2 + bb2
    return gamma[:, None, :] * text + beta[:, None, :]


def init_params(key, cond_dim, proj_dim):
    """PyTorch-Linear-style init, weights stored as (in, out) so y = x @ W + b."""
    keys = jax.random.split(key, 8)

    def linear(kw, kb, fan_in, fan_out):
        bound = fan_in ** -0.5
        w = jax.random.uniform(kw, (fan_in, fan_out), jnp.float32, -bound, bound)
        b = jax.random.uniform(kb, (fan_out,), jnp.float32, -bound, bound)
        return w, b

    wg1, bg1 = linear(keys[0], keys[1], cond_dim, proj_dim)
    wg2, bg2 = linear(keys[2], keys[3], proj_dim, proj_dim)
    wb1, bb1 = linear(keys[4], keys[5], cond_dim, proj_dim)
    wb2, bb2 = linear(keys[6], keys[7], proj_dim, proj_dim)
    return (wg1, bg1, wg2, bg2), (wb1, bb1, wb2, bb2)


if __name__ == "__main__":
    bs, num_labels = 2, 8
    condition_dim, proj_dim = 128, 256   # small, lane-aligned shapes

    key = jax.random.PRNGKey(0)
    k_text, k_skel, k_params = jax.random.split(key, 3)
    text = jax.random.normal(k_text, (bs, num_labels, proj_dim), jnp.float32)
    skeleton = jax.random.normal(k_skel, (bs, condition_dim), jnp.float32)
    gamma_params, beta_params = init_params(k_params, condition_dim, proj_dim)

    # One-time packing (outside the per-call path).
    packed_w, packed_b = prepack_film_params(gamma_params, beta_params)
    packed_w = jax.block_until_ready(packed_w)
    packed_b = jax.block_until_ready(packed_b)

    out = film_forward(text, skeleton, packed_w, packed_b)
    out = jax.block_until_ready(out)

    ref = film_ref(text, skeleton, gamma_params, beta_params)
    assert out.shape == (bs, num_labels, proj_dim)
    assert jnp.allclose(out, ref, atol=1e-3, rtol=1e-3), (
        f"max abs err = {jnp.max(jnp.abs(out - ref))}")

    print("KERNEL_OK")
</pallas_src>

<mosaic_0001>
module attributes {stable_mosaic.version = 11 : i64} {
  func.func @film_kernel(%arg0: memref<2x8x256xf32, #tpu.memory_space<vmem>>, %arg1: memref<2x128xf32, #tpu.memory_space<vmem>>, %arg2: memref<128x512xf32, #tpu.memory_space<vmem>>, %arg3: memref<1x512xf32, #tpu.memory_space<vmem>>, %arg4: memref<2x8x256xf32, #tpu.memory_space<vmem>>) attributes {dimension_semantics = [], scalar_prefetch = 0 : i64, scratch_operands = 0 : i64, tpu.core_type = #tpu.core_type<tc>} {
    %c0 = arith.constant 0 : index
    %c0_0 = arith.constant 0 : index
    %0 = vector.load %arg1[%c0, %c0_0] : memref<2x128xf32, #tpu.memory_space<vmem>>, vector<2x128xf32>
    %c0_1 = arith.constant 0 : index
    %c0_2 = arith.constant 0 : index
    %c0_3 = arith.constant 0 : index
    %1 = vector.load %arg0[%c0_1, %c0_2, %c0_3] : memref<2x8x256xf32, #tpu.memory_space<vmem>>, vector<2x8x256xf32>
    %c0_4 = arith.constant 0 : index
    %c0_5 = arith.constant 0 : index
    %2 = vector.load %arg2[%c0_4, %c0_5] : memref<128x512xf32, #tpu.memory_space<vmem>>, vector<128x512xf32>
    %cst = arith.constant dense<0.000000e+00> : vector<2x512xf32>
    %3 = tpu.matmul %0, %2, %cst {dimension_numbers = #tpu.dot_dimension_numbers<[1], [0], [0], [1], [0, 0, 1, 1], [], []>} : vector<2x128xf32>, vector<128x512xf32>, vector<2x512xf32> -> vector<2x512xf32>
    %c0_6 = arith.constant 0 : index
    %c0_7 = arith.constant 0 : index
    %4 = vector.load %arg3[%c0_6, %c0_7] : memref<1x512xf32, #tpu.memory_space<vmem>>, vector<1x512xf32>
    %5 = vector.broadcast %4 : vector<1x512xf32> to vector<2x512xf32>
    %6 = arith.addf %3, %5 : vector<2x512xf32>
    %7 = vector.extract_strided_slice %6 {offsets = [0, 0], sizes = [2, 256], strides = [1, 1]} : vector<2x512xf32> to vector<2x256xf32>
    %8 = vector.extract_strided_slice %6 {offsets = [0, 256], sizes = [2, 256], strides = [1, 1]} : vector<2x512xf32> to vector<2x256xf32>
    %9 = vector.shape_cast %7 : vector<2x256xf32> to vector<2x1x256xf32>
    %10 = vector.broadcast %9 : vector<2x1x256xf32> to vector<2x8x256xf32>
    %11 = arith.mulf %10, %1 : vector<2x8x256xf32>
    %12 = vector.shape_cast %8 : vector<2x256xf32> to vector<2x1x256xf32>
    %13 = vector.broadcast %12 : vector<2x1x256xf32> to vector<2x8x256xf32>
    %14 = arith.addf %11, %13 : vector<2x8x256xf32>
    %c0_8 = arith.constant 0 : index
    %c0_9 = arith.constant 0 : index
    %c0_10 = arith.constant 0 : index
    %15 = vector.load %arg4[%c0_8, %c0_9, %c0_10] : memref<2x8x256xf32, #tpu.memory_space<vmem>>, vector<2x8x256xf32>
    tpu.vector_store %arg4[%c0_8, %c0_9, %c0_10], %14 {strides = array<i32>} : memref<2x8x256xf32, #tpu.memory_space<vmem>>, vector<2x8x256xf32>,
    return
  }
}

</mosaic_0001>

<llo_original>
// kernel: tpu_custom_call.1
$region0: #{tpu_custom_call.1}
  #allocation0 [shape = 'u32[]', space=smem, size = 0x4, offset = 0x4, fixed_abs, tag = 'smem constant byte address 0x4 - core index']
  #allocation1 [shape = 'u32[144,128]{1,0:T(1,128)}', space=vmem, size = 0x12000, scoped, tag = 'internal scratch']
  %s0 = inlined_call_operand.hbm [shape: f32[2,8,256], index: 0, kind: input, shape index: {}]
  %s1 = inlined_call_operand.vmem [shape: f32[2,128], index: 1, kind: input, shape index: {}]
  %s2 = inlined_call_operand.hbm [shape: f32[128,512], index: 2, kind: input, shape index: {}]
  %s3 = inlined_call_operand.vmem [shape: f32[1,512], index: 3, kind: input, shape index: {}]
  %s4 = inlined_call_operand.hbm [shape: f32[2,8,256], index: 4, kind: output, shape index: {}]
  %s5 = sld [smem:[#allocation0]]
  $region34: #{tpu_custom_call.1} parent=0
    _
  %s7 = ssub.s32 1, %s5
  %s8 = scalar_select 0, %s7, %s5
  $region1: #{tpu_custom_call.1} parent=0
    #allocation2 [shape = 'u8[16384]{0}', space=vmem, size = 0x4000, scoped, tag = 'input window, operand 0, single buffered']
    #allocation3 [shape = 's32[1]{0}', space=sflag, size = 0x4, scoped, tag = 'scoped memory for tpu_custom_call.1']
    #allocation4 [shape = 's32[1]{0}', space=sflag, size = 0x4, scoped, tag = 'scoped memory for tpu_custom_call.1']
    #allocation5 [shape = 'u8[262144]{0}', space=vmem, size = 0x40000, scoped, tag = 'input window, operand 2, single buffered']
    #allocation6 [shape = 's32[1]{0}', space=sflag, size = 0x4, scoped, tag = 'scoped memory for tpu_custom_call.1']
    #allocation7 [shape = 'u8[16384]{0}', space=vmem, size = 0x4000, scoped, tag = 'output window, operand 0, single buffered']
    %9 = vsyncpa [#allocation3], 0
    %10 = vsyncpa [#allocation6], 0
    %11 = vsyncpa [#allocation4], 0
    // Predicated region
    $region2: #{tpu_custom_call.1} parent=1 // pred_check
      _
    $region3: #{tpu_custom_call.1} parent=1 // pred_check_branch
      %13 = sbr.rel (0) target = $region5
    $region4: #{tpu_custom_call.1} parent=1 // pred_region
      %s15 = ssub.s32 512, 512
      %16 = vsyncadd [#allocation3], %s15
      %s17 = sshll.u32 [#allocation2], 4
      %s18 = int_to_ptr.vmem [resolvable:$true] %s17
      %23 = dma.hbm_to_vmem [thread:$0]  %s0, 512, %s18, [#allocation3], 256, 256, 16
    $region5: #{tpu_custom_call.1} parent=1 // pred_fallthru
      _
    // Predicated region
    $region6: #{tpu_custom_call.1} parent=1 // pred_check
      _
    $region7: #{tpu_custom_call.1} parent=1 // pred_check_branch
      %25 = sbr.rel (0) target = $region9
    $region8: #{tpu_custom_call.1} parent=1 // pred_region
      _
    $region9: #{tpu_custom_call.1} parent=1 // pred_fallthru
      _
    // Predicated region
    $region10: #{tpu_custom_call.1} parent=1 // pred_check
      _
    $region11: #{tpu_custom_call.1} parent=1 // pred_check_branch
      %27 = sbr.rel (0) target = $region13
    $region12: #{tpu_custom_call.1} parent=1 // pred_region
      %s29 = ssub.s32 8192, 8192
      %30 = vsyncadd [#allocation6], %s29
      %s31 = sshll.u32 [#allocation5], 4
      %s32 = int_to_ptr.vmem [resolvable:$true] %s31
      %37 = dma.hbm_to_vmem [thread:$0]  %s2, 8192, %s32, [#allocation6], 512, 512, 32
    $region13: #{tpu_custom_call.1} parent=1 // pred_fallthru
      _
    // Predicated region
    $region14: #{tpu_custom_call.1} parent=1 // pred_check
      _
    $region15: #{tpu_custom_call.1} parent=1 // pred_check_branch
      %39 = sbr.rel (0) target = $region17
    $region16: #{tpu_custom_call.1} parent=1 // pred_region
      _
    $region17: #{tpu_custom_call.1} parent=1 // pred_fallthru
      _
    // Predicated region
    $region18: #{tpu_custom_call.1} parent=1 // pred_check
      _
    $region19: #{tpu_custom_call.1} parent=1 // pred_check_branch
      %41 = sbr.rel (0) target = $region21
    $region20: #{tpu_custom_call.1} parent=1 // pred_region
      %42 = dma.done [#allocation3], 512
    $region21: #{tpu_custom_call.1} parent=1 // pred_fallthru
      _
    // Predicated region
    $region22: #{tpu_custom_call.1} parent=1 // pred_check
      _
    $region23: #{tpu_custom_call.1} parent=1 // pred_check_branch
      %44 = sbr.rel (0) target = $region25
    $region24: #{tpu_custom_call.1} parent=1 // pred_region
      %45 = dma.done [#allocation6], 8192
    $region25: #{tpu_custom_call.1} parent=1 // pred_fallthru
      _
    %v46 = vld [vmem:[%s1] sm:$0x3]
    %v47 = vld [vmem:[#allocation2] sm:$0xff]
    %v48 = vld [vmem:[#allocation2 + $0x8] sm:$0xff]
    %v49 = vld [vmem:[#allocation2 + $0x10] sm:$0xff]
    %v50 = vld [vmem:[#allocation2 + $0x18] sm:$0xff]
    %v51 = vld [vmem:[#allocation5] sm:$0xff]
    %v52 = vld [vmem:[#allocation5 + $0x8] sm:$0xff]
    %v53 = vld [vmem:[#allocation5 + $0x10] sm:$0xff]
    %v54 = vld [vmem:[#allocation5 + $0x18] sm:$0xff]
    %v55 = vld [vmem:[#allocation5 + $0x20] sm:$0xff]
    %v56 = vld [vmem:[#allocation5 + $0x28] sm:$0xff]
    %v57 = vld [vmem:[#allocation5 + $0x30] sm:$0xff]
    %v58 = vld [vmem:[#allocation5 + $0x38] sm:$0xff]
    %v59 = vld [vmem:[#allocation5 + $0x40] sm:$0xff]
    %v60 = vld [vmem:[#allocation5 + $0x48] sm:$0xff]
    %v61 = vld [vmem:[#allocation5 + $0x50] sm:$0xff]
    %v62 = vld [vmem:[#allocation5 + $0x58] sm:$0xff]
    %v63 = vld [vmem:[#allocation5 + $0x60] sm:$0xff]
    %v64 = vld [vmem:[#allocation5 + $0x68] sm:$0xff]
    %v65 = vld [vmem:[#allocation5 + $0x70] sm:$0xff]
    %v66 = vld [vmem:[#allocation5 + $0x78] sm:$0xff]
    %v67 = vld [vmem:[#allocation5 + $0x80] sm:$0xff]
    %v68 = vld [vmem:[#allocation5 + $0x88] sm:$0xff]
    %v69 = vld [vmem:[#allocation5 + $0x90] sm:$0xff]
    %v70 = vld [vmem:[#allocation5 + $0x98] sm:$0xff]
    %v71 = vld [vmem:[#allocation5 + $0xa0] sm:$0xff]
    %v72 = vld [vmem:[#allocation5 + $0xa8] sm:$0xff]
    %v73 = vld [vmem:[#allocation5 + $0xb0] sm:$0xff]
    %v74 = vld [vmem:[#allocation5 + $0xb8] sm:$0xff]
    %v75 = vld [vmem:[#allocation5 + $0xc0] sm:$0xff]
    %v76 = vld [vmem:[#allocation5 + $0xc8] sm:$0xff]
    %v77 = vld [vmem:[#allocation5 + $0xd0] sm:$0xff]
    %v78 = vld [vmem:[#allocation5 + $0xd8] sm:$0xff]
    %v79 = vld [vmem:[#allocation5 + $0xe0] sm:$0xff]
    %v80 = vld [vmem:[#allocation5 + $0xe8] sm:$0xff]
    %v81 = vld [vmem:[#allocation5 + $0xf0] sm:$0xff]
    %v82 = vld [vmem:[#allocation5 + $0xf8] sm:$0xff]
    %v83 = vld [vmem:[#allocation5 + $0x100] sm:$0xff]
    %v84 = vld [vmem:[#allocation5 + $0x108] sm:$0xff]
    %v85 = vld [vmem:[#allocation5 + $0x110] sm:$0xff]
    %v86 = vld [vmem:[#allocation5 + $0x118] sm:$0xff]
    %v87 = vld [vmem:[#allocation5 + $0x120] sm:$0xff]
    %v88 = vld [vmem:[#allocation5 + $0x128] sm:$0xff]
    %v89 = vld [vmem:[#allocation5 + $0x130] sm:$0xff]
    %v90 = vld [vmem:[#allocation5 + $0x138] sm:$0xff]
    %v91 = vld [vmem:[#allocation5 + $0x140] sm:$0xff]
    %v92 = vld [vmem:[#allocation5 + $0x148] sm:$0xff]
    %v93 = vld [vmem:[#allocation5 + $0x150] sm:$0xff]
    %v94 = vld [vmem:[#allocation5 + $0x158] sm:$0xff]
    %v95 = vld [vmem:[#allocation5 + $0x160] sm:$0xff]
    %v96 = vld [vmem:[#allocation5 + $0x168] sm:$0xff]
    %v97 = vld [vmem:[#allocation5 + $0x170] sm:$0xff]
    %v98 = vld [vmem:[#allocation5 + $0x178] sm:$0xff]
    %v99 = vld [vmem:[#allocation5 + $0x180] sm:$0xff]
    %v100 = vld [vmem:[#allocation5 + $0x188] sm:$0xff]
    %v101 = vld [vmem:[#allocation5 + $0x190] sm:$0xff]
    %v102 = vld [vmem:[#allocation5 + $0x198] sm:$0xff]
    %v103 = vld [vmem:[#allocation5 + $0x1a0] sm:$0xff]
    %v104 = vld [vmem:[#allocation5 + $0x1a8] sm:$0xff]
    %v105 = vld [vmem:[#allocation5 + $0x1b0] sm:$0xff]
    %v106 = vld [vmem:[#allocation5 + $0x1b8] sm:$0xff]
    %v107 = vld [vmem:[#allocation5 + $0x1c0] sm:$0xff]
    %v108 = vld [vmem:[#allocation5 + $0x1c8] sm:$0xff]
    %v109 = vld [vmem:[#allocation5 + $0x1d0] sm:$0xff]
    %v110 = vld [vmem:[#allocation5 + $0x1d8] sm:$0xff]
    %v111 = vld [vmem:[#allocation5 + $0x1e0] sm:$0xff]
    %v112 = vld [vmem:[#allocation5 + $0x1e8] sm:$0xff]
    %v113 = vld [vmem:[#allocation5 + $0x1f0] sm:$0xff]
    %v114 = vld [vmem:[#allocation5 + $0x1f8] sm:$0xff]
    %v115 = vld [vmem:[%s3] sm:$0xf]
    %v117 = vlaneseq
    %v118 = vshrl.u32 %v117, 7
    %v119 = vsub.s32 0, %v118
    %v120 = vrot.slane %v115, %v119
    %v121 = vlaneseq
    %v122 = vshrl.u32 %v121, 7
    %v123 = vsub.s32 1, %v122
    %v124 = vrot.slane %v115, %v123
    %v125 = vlaneseq
    %v126 = vshrl.u32 %v125, 7
    %v127 = vsub.s32 2, %v126
    %v128 = vrot.slane %v115, %v127
    %v129 = vlaneseq
    %v130 = vshrl.u32 %v129, 7
    %v131 = vsub.s32 3, %v130
    %v132 = vrot.slane %v115, %v131
    %137 = vmatprep.subr.mxu0 %v52
    %138 = vmatpush1.msra.mxu0 %v51
    %139 = vmatprep.subr.mxu0 %v56
    %140 = vmatpush1.msra.mxu0 %v55
    %141 = vmatprep.subr.mxu0 %v60
    %142 = vmatpush1.msra.mxu0 %v59
    %143 = vmatprep.subr.mxu0 %v64
    %144 = vmatpush1.msra.mxu0 %v63
    %145 = vmatprep.subr.mxu0 %v68
    %146 = vmatpush1.msra.mxu0 %v67
    %147 = vmatprep.subr.mxu0 %v72
    %148 = vmatpush1.msra.mxu0 %v71
    %149 = vmatprep.subr.mxu0 %v76
    %150 = vmatpush1.msra.mxu0 %v75
    %151 = vmatprep.subr.mxu0 %v80
    %152 = vmatpush1.msra.mxu0 %v79
    %153 = vmatprep.subr.mxu0 %v84
    %154 = vmatpush1.msra.mxu0 %v83
    %155 = vmatprep.subr.mxu0 %v88
    %156 = vmatpush1.msra.mxu0 %v87
    %157 = vmatprep.subr.mxu0 %v92
    %158 = vmatpush1.msra.mxu0 %v91
    %159 = vmatprep.subr.mxu0 %v96
    %160 = vmatpush1.msra.mxu0 %v95
    %161 = vmatprep.subr.mxu0 %v100
    %162 = vmatpush1.msra.mxu0 %v99
    %163 = vmatprep.subr.mxu0 %v104
    %164 = vmatpush1.msra.mxu0 %v103
    %165 = vmatprep.subr.mxu0 %v108
    %166 = vmatpush1.msra.mxu0 %v107
    %167 = vmatprep.subr.mxu0 %v112
    %168 = vmatpush1.msra.mxu0 %v111
    %169 = vmatprep.subr.mxu0 0.0
    %170 = vmatpush1.msra.mxu0 0.0
    %171 = vmatprep.subr.mxu0 0.0
    %172 = vmatpush1.msra.mxu0 0.0
    %173 = vmatprep.subr.mxu0 0.0
    %174 = vmatpush1.msra.mxu0 0.0
    %175 = vmatprep.subr.mxu0 0.0
    %176 = vmatpush1.msra.mxu0 0.0
    %177 = vmatprep.subr.mxu0 0.0
    %178 = vmatpush1.msra.mxu0 0.0
    %179 = vmatprep.subr.mxu0 0.0
    %180 = vmatpush1.msra.mxu0 0.0
    %181 = vmatprep.subr.mxu0 0.0
    %182 = vmatpush1.msra.mxu0 0.0
    %183 = vmatprep.subr.mxu0 0.0
    %184 = vmatpush1.msra.mxu0 0.0
    %185 = vmatprep.subr.mxu0 0.0
    %186 = vmatpush1.msra.mxu0 0.0
    %187 = vmatprep.subr.mxu0 0.0
    %188 = vmatpush1.msra.mxu0 0.0
    %189 = vmatprep.subr.mxu0 0.0
    %190 = vmatpush1.msra.mxu0 0.0
    %191 = vmatprep.subr.mxu0 0.0
    %192 = vmatpush1.msra.mxu0 0.0
    %193 = vmatprep.subr.mxu0 0.0
    %194 = vmatpush1.msra.mxu0 0.0
    %195 = vmatprep.subr.mxu0 0.0
    %196 = vmatpush1.msra.mxu0 0.0
    %197 = vmatprep.subr.mxu0 0.0
    %198 = vmatpush1.msra.mxu0 0.0
    %199 = vmatprep.subr.mxu0 0.0
    %200 = vmatpush1.msra.mxu0 0.0
    %201 = vmatprep.mubr.f32.mxu0 0.0
    %202 = vmatmul.mubr.f32.gmra.mrb[0].mxu0 %v46
    %v203 = vpop.f32.mrb[0].mxu0
    %v204 = vadd.f32 %v120, %v203
    %v205 = vpop.f32.mrb[0].mxu0
    %v206 = vadd.f32 %v124, %v205
    %207 = vdwg.mxu0
    %208 = vmatprep.subr.mxu0 %v54
    %209 = vmatpush1.msra.mxu0 %v53
    %210 = vmatprep.subr.mxu0 %v58
    %211 = vmatpush1.msra.mxu0 %v57
    %212 = vmatprep.subr.mxu0 %v62
    %213 = vmatpush1.msra.mxu0 %v61
    %214 = vmatprep.subr.mxu0 %v66
    %215 = vmatpush1.msra.mxu0 %v65
    %216 = vmatprep.subr.mxu0 %v70
    %217 = vmatpush1.msra.mxu0 %v69
    %218 = vmatprep.subr.mxu0 %v74
    %219 = vmatpush1.msra.mxu0 %v73
    %220 = vmatprep.subr.mxu0 %v78
    %221 = vmatpush1.msra.mxu0 %v77
    %222 = vmatprep.subr.mxu0 %v82
    %223 = vmatpush1.msra.mxu0 %v81
    %224 = vmatprep.subr.mxu0 %v86
    %225 = vmatpush1.msra.mxu0 %v85
    %226 = vmatprep.subr.mxu0 %v90
    %227 = vmatpush1.msra.mxu0 %v89
    %228 = vmatprep.subr.mxu0 %v94
    %229 = vmatpush1.msra.mxu0 %v93
    %230 = vmatprep.subr.mxu0 %v98
    %231 = vmatpush1.msra.mxu0 %v97
    %232 = vmatprep.subr.mxu0 %v102
    %233 = vmatpush1.msra.mxu0 %v101
    %234 = vmatprep.subr.mxu0 %v106
    %235 = vmatpush1.msra.mxu0 %v105
    %236 = vmatprep.subr.mxu0 %v110
    %237 = vmatpush1.msra.mxu0 %v109
    %238 = vmatprep.subr.mxu0 %v114
    %239 = vmatpush1.msra.mxu0 %v113
    %240 = vmatprep.subr.mxu0 0.0
    %241 = vmatpush1.msra.mxu0 0.0
    %242 = vmatprep.subr.mxu0 0.0
    %243 = vmatpush1.msra.mxu0 0.0
    %244 = vmatprep.subr.mxu0 0.0
    %245 = vmatpush1.msra.mxu0 0.0
    %246 = vmatprep.subr.mxu0 0.0
    %247 = vmatpush1.msra.mxu0 0.0
    %248 = vmatprep.subr.mxu0 0.0
    %249 = vmatpush1.msra.mxu0 0.0
    %250 = vmatprep.subr.mxu0 0.0
    %251 = vmatpush1.msra.mxu0 0.0
    %252 = vmatprep.subr.mxu0 0.0
    %253 = vmatpush1.msra.mxu0 0.0
    %254 = vmatprep.subr.mxu0 0.0
    %255 = vmatpush1.msra.mxu0 0.0
    %256 = vmatprep.subr.mxu0 0.0
    %257 = vmatpush1.msra.mxu0 0.0
    %258 = vmatprep.subr.mxu0 0.0
    %259 = vmatpush1.msra.mxu0 0.0
    %260 = vmatprep.subr.mxu0 0.0
    %261 = vmatpush1.msra.mxu0 0.0
    %262 = vmatprep.subr.mxu0 0.0
    %263 = vmatpush1.msra.mxu0 0.0
    %264 = vmatprep.subr.mxu0 0.0
    %265 = vmatpush1.msra.mxu0 0.0
    %266 = vmatprep.subr.mxu0 0.0
    %267 = vmatpush1.msra.mxu0 0.0
    %268 = vmatprep.subr.mxu0 0.0
    %269 = vmatpush1.msra.mxu0 0.0
    %270 = vmatprep.subr.mxu0 0.0
    %271 = vmatpush1.msra.mxu0 0.0
    %272 = vmatprep.mubr.f32.mxu0 0.0
    %273 = vmatmul.mubr.f32.gmra.mrb[0].mxu0 %v46
    %v274 = vpop.f32.mrb[0].mxu0
    %v275 = vadd.f32 %v128, %v274
    %v276 = vpop.f32.mrb[0].mxu0
    %v277 = vadd.f32 %v132, %v276
    %278 = vdwg.mxu0
    %v281 = vcombine.low %v204, %v206
    %v283 = vunpack.c.l.s4 1966171168
    %v284 = vunpack.c.0.s8 %v283
    %v285 = vlaneseq
    %v286 = vshrl.u32 %v285, 7
    %v287 = vsub.s32 %v284, %v286
    %v288 = vrot.slane %v281, %v287
    %v289 = vcombine.high %v288, %v288
    %v291 = vunpack.c.l.s4 1966171168
    %v292 = vunpack.c.0.s8 %v291
    %v293 = vlaneseq
    %v294 = vshrl.u32 %v293, 7
    %v295 = vsub.s32 %v292, %v294
    %v296 = vrot.slane %v288, %v295
    %v298 = vunpack.c.l.s4 1966171168
    %v299 = vunpack.c.0.s8 %v298
    %v300 = vlaneseq
    %v301 = vshrl.u32 %v300, 7
    %v302 = vsub.s32 %v299, %v301
    %v303 = vrot.slane %v289, %v302
    %v304 = vlaneseq
    %v305 = vshrl.u32 %v304, 7
    %v306 = vsub.s32 0, %v305
    %v307 = vrot.slane %v296, %v306
    %v308 = vlaneseq
    %v309 = vshrl.u32 %v308, 7
    %v310 = vsub.s32 1, %v309
    %v311 = vrot.slane %v296, %v310
    %v312 = vlaneseq
    %v313 = vshrl.u32 %v312, 7
    %v314 = vsub.s32 0, %v313
    %v315 = vrot.slane %v303, %v314
    %v316 = vlaneseq
    %v317 = vshrl.u32 %v316, 7
    %v318 = vsub.s32 1, %v317
    %v319 = vrot.slane %v303, %v318
    %v324 = vmul.f32 %v307, %v47
    %v325 = vmul.f32 %v311, %v48
    %v326 = vmul.f32 %v315, %v49
    %v327 = vmul.f32 %v319, %v50
    %v330 = vcombine.low %v275, %v277
    %v332 = vunpack.c.l.s4 1966171168
    %v333 = vunpack.c.0.s8 %v332
    %v334 = vlaneseq
    %v335 = vshrl.u32 %v334, 7
    %v336 = vsub.s32 %v333, %v335
    %v337 = vrot.slane %v330, %v336
    %v338 = vcombine.high %v337, %v337
    %v340 = vunpack.c.l.s4 1966171168
    %v341 = vunpack.c.0.s8 %v340
    %v342 = vlaneseq
    %v343 = vshrl.u32 %v342, 7
    %v344 = vsub.s32 %v341, %v343
    %v345 = vrot.slane %v337, %v344
    %v347 = vunpack.c.l.s4 1966171168
    %v348 = vunpack.c.0.s8 %v347
    %v349 = vlaneseq
    %v350 = vshrl.u32 %v349, 7
    %v351 = vsub.s32 %v348, %v350
    %v352 = vrot.slane %v338, %v351
    %v353 = vlaneseq
    %v354 = vshrl.u32 %v353, 7
    %v355 = vsub.s32 0, %v354
    %v356 = vrot.slane %v345, %v355
    %v357 = vlaneseq
    %v358 = vshrl.u32 %v357, 7
    %v359 = vsub.s32 1, %v358
    %v360 = vrot.slane %v345, %v359
    %v361 = vlaneseq
    %v362 = vshrl.u32 %v361, 7
    %v363 = vsub.s32 0, %v362
    %v364 = vrot.slane %v352, %v363
    %v365 = vlaneseq
    %v366 = vshrl.u32 %v365, 7
    %v367 = vsub.s32 1, %v366
    %v368 = vrot.slane %v352, %v367
    %v373 = vadd.f32 %v324, %v356
    %v374 = vadd.f32 %v325, %v360
    %v375 = vadd.f32 %v326, %v364
    %v376 = vadd.f32 %v327, %v368
    %377 = vst [vmem:[#allocation7] sm:$0xff] %v373
    %378 = vst [vmem:[#allocation7 + $0x8] sm:$0xff] %v374
    %379 = vst [vmem:[#allocation7 + $0x10] sm:$0xff] %v375
    %380 = vst [vmem:[#allocation7 + $0x18] sm:$0xff] %v376
    // Predicated region
    $region26: #{tpu_custom_call.1} parent=1 // pred_check
      _
    $region27: #{tpu_custom_call.1} parent=1 // pred_check_branch
      %382 = sbr.rel (0) target = $region29
    $region28: #{tpu_custom_call.1} parent=1 // pred_region
      %s384 = ssub.s32 512, 512
      %385 = vsyncadd [#allocation4], %s384
      %s386 = sshll.u32 [#allocation7], 4
      %s387 = int_to_ptr.vmem [resolvable:$true] %s386
      %392 = dma.vmem_to_hbm [thread:$0]  %s387, 512, %s4, [#allocation4], 256, 256, 16
    $region29: #{tpu_custom_call.1} parent=1 // pred_fallthru
      _
    // Predicated region
    $region30: #{tpu_custom_call.1} parent=1 // pred_check
      _
    $region31: #{tpu_custom_call.1} parent=1 // pred_check_branch
      %394 = sbr.rel (0) target = $region33
    $region32: #{tpu_custom_call.1} parent=1 // pred_region
      %395 = dma.done [#allocation4], 512
    $region33: #{tpu_custom_call.1} parent=1 // pred_fallthru
      _
    %396 = vsyncpa [#allocation3], 1
    %397 = vsyncpa [#allocation6], 1
    %398 = vsyncpa [#allocation4], 1

</llo_original>
